<compile_context>
chip_gen: v7x
topology: tpu7x:2x2x1
jax: 0.10.0
libtpu: 0.0.40
codegen_flags: <defaults>
</compile_context>

<pallas_src>
import functools

import jax
import jax.numpy as jnp
from jax.experimental import pallas as pl
from jax.experimental.pallas import tpu as pltpu


MAX_TILE_ROWS = 1024          # packed output rows per grid step (sweep 512-2048)
_X_VOCAB, _EA_VOCAB, _TF_VOCAB = 32, 16, 16
_STACK_VOCAB = _X_VOCAB + _EA_VOCAB + _TF_VOCAB   # 64 stacked rows


def _round_up(x: int, m: int) -> int:
    return ((x + m - 1) // m) * m


def _embed_kernel(idx_ref, hi_ref, lo_ref, out_ref):
    """One tile of the fused, packed embedding gather.

    idx_ref : (TR, K)   int32  group-offset indices into the packed table
    hi_ref  : (K*V, W)  bf16   bf16(table)            (block-diagonal, resident)
    lo_ref  : (K*V, W)  bf16   bf16(table - f32(hi))  (residual,       resident)
    out_ref : (TR, W)   f32    K packed embeddings per output row
    """
    idx = idx_ref[...]                               # (TR, K) int32
    hi = hi_ref[...]                                 # (KV, W) bf16
    lo = lo_ref[...]                                 # (KV, W) bf16
    tr, k = idx.shape
    kv = hi.shape[0]

    # Multi-hot (TR, KV): exactly one 1 per group; groups occupy disjoint row
    # ranges of the packed table, so OR == sum.  iota is lane-dense; each
    # compare broadcasts a (TR, 1) index column across lanes (VPU work only).
    iota = jax.lax.broadcasted_iota(jnp.int32, (tr, kv), 1)
    oh = iota == idx[:, 0:1]
    for g in range(1, k):                            # k is small & static
        oh = jnp.logical_or(oh, iota == idx[:, g : g + 1])
    oh = oh.astype(jnp.bfloat16)                     # exact: values are 0/1

    # Two single-pass bf16 MXU matmuls accumulated in f32 (hi + residual)
    # instead of one ~3x-multipass f32 matmul.
    acc = jnp.dot(oh, hi, preferred_element_type=jnp.float32)
    acc = acc + jnp.dot(oh, lo, preferred_element_type=jnp.float32)
    out_ref[...] = acc.astype(out_ref.dtype)


@functools.partial(jax.jit, static_argnames=("hiddim", "pack"))
def _fused_encode(x_codes, a_vals, t_vals, tab_hi, tab_lo, *, hiddim, pack):
    """Fused lookup for all three encoders; returns (x_emb, a_emb, t_emb)."""
    v = _STACK_VOCAB
    kv, w = tab_hi.shape

    x_idx = x_codes.reshape(-1).astype(jnp.int32)
    a_idx = a_vals.reshape(-1).astype(jnp.int32) + _X_VOCAB
    t_idx = t_vals.reshape(-1).astype(jnp.int32) + _X_VOCAB + _EA_VOCAB
    nx, na, nt = x_idx.shape[0], a_idx.shape[0], t_idx.shape[0]
    n = nx + na + nt
    fused = jnp.concatenate([x_idx, a_idx, t_idx])

    # --- tiling ----------------------------------------------------------
    n_rows = pl.cdiv(n, pack)                        # packed output rows needed
    # >=2 grid steps whenever possible (keeps both v7x TensorCores busy),
    # capped at MAX_TILE_ROWS (HBM-roofline sweet spot), multiple of 8 sublanes.
    tile_r = min(MAX_TILE_ROWS, max(8, _round_up(pl.cdiv(n_rows, 2), 8)))
    n_tiles = pl.cdiv(n_rows, tile_r)
    n_rows_pad = n_tiles * tile_r

    # Pad with index 0 (a valid row); padded outputs are sliced off below.
    fused = jnp.pad(fused, (0, n_rows_pad * pack - n))
    idx2d = fused.reshape(n_rows_pad, pack)
    # Position p -> group g = p % pack -> rows [g*V, (g+1)*V) of packed table.
    idx2d = idx2d + jnp.arange(pack, dtype=jnp.int32)[None, :] * v

    out = pl.pallas_call(
        _embed_kernel,
        out_shape=jax.ShapeDtypeStruct((n_rows_pad, w), jnp.float32),
        grid=(n_tiles,),
        in_specs=[
            pl.BlockSpec((tile_r, pack), lambda i: (i, 0)),   # index tile
            pl.BlockSpec((kv, w), lambda i: (0, 0)),          # hi table, resident
            pl.BlockSpec((kv, w), lambda i: (0, 0)),          # lo table, resident
        ],
        out_specs=pl.BlockSpec((tile_r, w), lambda i: (i, 0)),
        compiler_params=pltpu.CompilerParams(
            dimension_semantics=("parallel",),   # grid steps independent -> 2 TCs on v7x
        ),
        cost_estimate=pl.CostEstimate(
            flops=2 * 2 * n_rows_pad * kv * w,
            transcendentals=0,
            bytes_accessed=n_rows_pad * pack * 4 + n_rows_pad * w * 4 + 2 * kv * w * 2,
        ),
    )(idx2d, tab_hi, tab_lo)

    if pack > 1:
        # (rows, pack*hiddim) row-major has the same linear layout as
        # (rows*pack, hiddim) -> free reshape, no column slice needed.
        flat = out.reshape(n_rows_pad * pack, hiddim)
    elif w == hiddim:
        flat = out
    else:
        # Fallback only when hiddim does not divide 128: trim lane padding.
        flat = out[:, :hiddim]

    # Segment splits (inside jit -> fused into exactly-sized copies).
    x_emb = flat[:nx]
    a_emb = flat[nx : nx + na]
    t_emb = flat[nx + na : nx + na + nt]
    return x_emb, a_emb, t_emb


class InputEncoderSpPallas:
    """JAX/Pallas port of InputEncoderSp (three embeddings fused into one lookup)."""

    def __init__(self, hiddim: int, key):
        kx, ka, kt = jax.random.split(key, 3)
        self.hiddim = hiddim
        # nn.Embedding default init: N(0, 1), float32.
        self.x_table = jax.random.normal(kx, (_X_VOCAB, hiddim), dtype=jnp.float32)
        self.ea_table = jax.random.normal(ka, (_EA_VOCAB, hiddim), dtype=jnp.float32)
        self.tuplefeat_table = jax.random.normal(kt, (_TF_VOCAB, hiddim), dtype=jnp.float32)

        stacked = jnp.concatenate(
            [self.x_table, self.ea_table, self.tuplefeat_table], axis=0
        )  # (64, hiddim): rows [0,32) x, [32,48) ea, [48,64) tuplefeat

        # Pack k = 128 // hiddim embeddings per 128-lane output row when possible
        # (block-diagonal table); otherwise pad hiddim up to a 128 multiple.
        if hiddim <= 128 and 128 % hiddim == 0 and 128 // hiddim <= 16:
            self.pack = 128 // hiddim
            w = 128
        else:
            self.pack = 1
            w = _round_up(hiddim, 128)

        packed = jnp.zeros((self.pack * _STACK_VOCAB, w), dtype=jnp.float32)
        for g in range(self.pack):
            packed = packed.at[
                g * _STACK_VOCAB : (g + 1) * _STACK_VOCAB,
                g * hiddim : (g + 1) * hiddim,
            ].set(stacked)

        # bf16 hi + bf16 residual split of the f32 table (two single-pass MXU
        # matmuls; reconstructs f32 values to ~2^-18 relative error).
        self.tab_hi = packed.astype(jnp.bfloat16)
        self.tab_lo = (packed - self.tab_hi.astype(jnp.float32)).astype(jnp.bfloat16)

    def __call__(self, datadict: dict) -> dict:
        # TODO(synk): the PyTorch SparseTensor.tuplewiseapply container has no JAX
        # equivalent; sparse tensors are modeled as (indices, values) tuples and
        # only the values are embedded (indices pass through untouched).
        a_ind, a_val = datadict["A"]
        x_ind, xt_val = datadict["X"]
        x_emb, a_emb, t_emb = _fused_encode(
            datadict["x"], a_val, xt_val, self.tab_hi, self.tab_lo,
            hiddim=self.hiddim, pack=self.pack,
        )
        datadict["x"] = x_emb
        datadict["A"] = (a_ind, a_emb)
        datadict["X"] = (x_ind, t_emb)
        return datadict


if __name__ == "__main__":
    key = jax.random.PRNGKey(0)
    k_model, k_x, k_a, k_xt = jax.random.split(key, 4)

    hiddim = 32
    num_nodes = 16   # |V| for the toy graph
    nnz_a = 24       # nnz of sparse adjacency A (edge-attr codes)
    nnz_x = 24       # nnz of sparse tuple-feature tensor X

    # Integer codes, matching the embedding vocab sizes (32 / 16 / 16).
    x_codes = jax.random.randint(k_x, (num_nodes,), 0, 32, dtype=jnp.int32)
    a_vals = jax.random.randint(k_a, (nnz_a,), 0, 16, dtype=jnp.int32)
    xt_vals = jax.random.randint(k_xt, (nnz_x,), 0, 16, dtype=jnp.int32)

    # Sparse-tensor glue: (indices, values). Indices are untouched by the module.
    a_indices = jnp.stack(
        [jnp.arange(nnz_a, dtype=jnp.int32) % num_nodes,
         (jnp.arange(nnz_a, dtype=jnp.int32) * 3) % num_nodes]
    )
    x_indices = jnp.stack(
        [jnp.arange(nnz_x, dtype=jnp.int32) % num_nodes,
         (jnp.arange(nnz_x, dtype=jnp.int32) * 5) % num_nodes]
    )

    datadict = {
        "x": x_codes,
        "A": (a_indices, a_vals),
        "X": (x_indices, xt_vals),
    }

    enc = InputEncoderSpPallas(hiddim, k_model)
    out = enc(datadict)

    x_emb = jax.block_until_ready(out["x"])
    a_emb = jax.block_until_ready(out["A"][1])
    xt_emb = jax.block_until_ready(out["X"][1])

    # Cross-check against the plain-JAX reference gather.  The bf16 hi+lo table
    # split reconstructs the f32 embeddings to ~4e-6 relative error.
    assert x_emb.shape == (num_nodes, hiddim)
    assert a_emb.shape == (nnz_a, hiddim)
    assert xt_emb.shape == (nnz_x, hiddim)
    assert jnp.allclose(x_emb, enc.x_table[x_codes], atol=1e-4, rtol=1e-4)
    assert jnp.allclose(a_emb, enc.ea_table[a_vals], atol=1e-4, rtol=1e-4)
    assert jnp.allclose(xt_emb, enc.tuplefeat_table[xt_vals], atol=1e-4, rtol=1e-4)
    # Indices of the sparse tensors must pass through untouched.
    assert jnp.array_equal(out["A"][0], a_indices)
    assert jnp.array_equal(out["X"][0], x_indices)

    print("KERNEL_OK")
</pallas_src>

<mosaic_0001>
module attributes {stable_mosaic.version = 11 : i64} {
  func.func @_embed_kernel(%arg0: i32, %arg1: memref<8x4xi32, #tpu.memory_space<vmem>>, %arg2: memref<256x128xbf16, #tpu.memory_space<vmem>>, %arg3: memref<256x128xbf16, #tpu.memory_space<vmem>>, %arg4: memref<8x128xf32, #tpu.memory_space<vmem>>) attributes {dimension_semantics = [#tpu.dimension_semantics<parallel>], iteration_bounds = array<i64: 2>, scalar_prefetch = 0 : i64, scratch_operands = 0 : i64, tpu.core_type = #tpu.core_type<tc>, window_params = [{transform_indices = @transform_0, window_bounds = array<i64: 8, 4>}, {pipeline_mode = #tpu.pipeline_mode<synchronous>, transform_indices = @transform_1, window_bounds = array<i64: 256, 128>}, {pipeline_mode = #tpu.pipeline_mode<synchronous>, transform_indices = @transform_2, window_bounds = array<i64: 256, 128>}, {transform_indices = @transform_3, window_bounds = array<i64: 8, 128>}]} {
    %c0 = arith.constant 0 : index
    %c0_0 = arith.constant 0 : index
    %0 = vector.load %arg1[%c0, %c0_0] : memref<8x4xi32, #tpu.memory_space<vmem>>, vector<8x4xi32>
    %c0_1 = arith.constant 0 : index
    %c0_2 = arith.constant 0 : index
    %1 = vector.load %arg2[%c0_1, %c0_2] : memref<256x128xbf16, #tpu.memory_space<vmem>>, vector<256x128xbf16>
    %c0_3 = arith.constant 0 : index
    %c0_4 = arith.constant 0 : index
    %2 = vector.load %arg3[%c0_3, %c0_4] : memref<256x128xbf16, #tpu.memory_space<vmem>>, vector<256x128xbf16>
    %3 = tpu.iota {dimensions = array<i32: 1>} : vector<8x256xi32>
    %4 = vector.extract_strided_slice %0 {offsets = [0, 0], sizes = [8, 1], strides = [1, 1]} : vector<8x4xi32> to vector<8x1xi32>
    %5 = vector.broadcast %4 : vector<8x1xi32> to vector<8x256xi32>
    %6 = arith.cmpi eq, %3, %5 : vector<8x256xi32>
    %7 = vector.extract_strided_slice %0 {offsets = [0, 1], sizes = [8, 1], strides = [1, 1]} : vector<8x4xi32> to vector<8x1xi32>
    %8 = vector.broadcast %7 : vector<8x1xi32> to vector<8x256xi32>
    %9 = arith.cmpi eq, %3, %8 : vector<8x256xi32>
    %10 = arith.ori %6, %9 : vector<8x256xi1>
    %11 = vector.extract_strided_slice %0 {offsets = [0, 2], sizes = [8, 1], strides = [1, 1]} : vector<8x4xi32> to vector<8x1xi32>
    %12 = vector.broadcast %11 : vector<8x1xi32> to vector<8x256xi32>
    %13 = arith.cmpi eq, %3, %12 : vector<8x256xi32>
    %14 = arith.ori %10, %13 : vector<8x256xi1>
    %15 = vector.extract_strided_slice %0 {offsets = [0, 3], sizes = [8, 1], strides = [1, 1]} : vector<8x4xi32> to vector<8x1xi32>
    %16 = vector.broadcast %15 : vector<8x1xi32> to vector<8x256xi32>
    %17 = arith.cmpi eq, %3, %16 : vector<8x256xi32>
    %18 = arith.ori %14, %17 : vector<8x256xi1>
    %19 = arith.extui %18 : vector<8x256xi1> to vector<8x256xi32>
    %20 = arith.sitofp %19 : vector<8x256xi32> to vector<8x256xf32>
    %21 = arith.truncf %20 : vector<8x256xf32> to vector<8x256xbf16>
    %cst = arith.constant dense<0.000000e+00> : vector<8x128xf32>
    %22 = tpu.matmul %21, %1, %cst {dimension_numbers = #tpu.dot_dimension_numbers<[1], [0], [0], [1], [0, 0, 1, 1], [], []>} : vector<8x256xbf16>, vector<256x128xbf16>, vector<8x128xf32> -> vector<8x128xf32>
    %cst_5 = arith.constant dense<0.000000e+00> : vector<8x128xf32>
    %23 = tpu.matmul %21, %2, %cst_5 {dimension_numbers = #tpu.dot_dimension_numbers<[1], [0], [0], [1], [0, 0, 1, 1], [], []>} : vector<8x256xbf16>, vector<256x128xbf16>, vector<8x128xf32> -> vector<8x128xf32>
    %24 = arith.addf %22, %23 : vector<8x128xf32>
    %c0_6 = arith.constant 0 : index
    %c0_7 = arith.constant 0 : index
    %25 = vector.load %arg4[%c0_6, %c0_7] : memref<8x128xf32, #tpu.memory_space<vmem>>, vector<8x128xf32>
    tpu.vector_store %arg4[%c0_6, %c0_7], %24 {strides = array<i32>} : memref<8x128xf32, #tpu.memory_space<vmem>>, vector<8x128xf32>,
    return
  }
  func.func @transform_0(%arg0: i32) -> (i32, i32) {
    %c0_i32 = arith.constant 0 : i32
    %c0_i32_0 = arith.constant 0 : i32
    return %arg0, %c0_i32 : i32, i32
  }
  func.func @transform_1(%arg0: i32) -> (i32, i32) {
    %c0_i32 = arith.constant 0 : i32
    %c0_i32_0 = arith.constant 0 : i32
    %c0_i32_1 = arith.constant 0 : i32
    return %c0_i32, %c0_i32_0 : i32, i32
  }
  func.func @transform_2(%arg0: i32) -> (i32, i32) {
    %c0_i32 = arith.constant 0 : i32
    %c0_i32_0 = arith.constant 0 : i32
    %c0_i32_1 = arith.constant 0 : i32
    return %c0_i32, %c0_i32_0 : i32, i32
  }
  func.func @transform_3(%arg0: i32) -> (i32, i32) {
    %c0_i32 = arith.constant 0 : i32
    %c0_i32_0 = arith.constant 0 : i32
    return %arg0, %c0_i32 : i32, i32
  }
}

</mosaic_0001>

<llo_original>
// kernel: _fused_encode.1
$region0: #{_fused_encode.1}
  #allocation0 [shape = 'u32[]', space=smem, size = 0x4, offset = 0x4, fixed_abs, tag = 'smem constant byte address 0x4 - core index']
  #allocation1 [shape = 'u32[144,128]{1,0:T(1,128)}', space=vmem, size = 0x12000, scoped, tag = 'internal scratch']
  %s0 = inlined_call_operand.vmem [shape: s32[16,4], index: 0, kind: input, shape index: {}]
  %s1 = inlined_call_operand.hbm [shape: bf16[256,128], index: 1, kind: input, shape index: {}]
  %s2 = inlined_call_operand.hbm [shape: bf16[256,128], index: 2, kind: input, shape index: {}]
  %s3 = inlined_call_operand.vmem [shape: f32[16,128], index: 3, kind: output, shape index: {}]
  %s4 = sld [smem:[#allocation0]]
  $region53: #{_fused_encode.1} parent=0
    _
  %s6 = ssub.s32 1, %s4
  %s7 = scalar_select 0, %s6, %s4
  $region1: #{_fused_encode.1} parent=0
    #allocation2 [shape = 'u8[65536]{0}', space=vmem, size = 0x10000, scoped, tag = 'input window, operand 1, single buffered']
    #allocation3 [shape = 's32[2]{0}', space=sflag, size = 0x8, scoped, tag = 'scoped memory for _fused_encode.1']
    #allocation4 [shape = 'u8[65536]{0}', space=vmem, size = 0x10000, scoped, tag = 'input window, operand 2, single buffered']
    #allocation5 [shape = 's32[1]{0}', space=sflag, size = 0x4, scoped, tag = 'scoped memory for _fused_encode.1']
    %8 = vsyncpa [#allocation3], 0
    %9 = vsyncpa [#allocation5], 0
    loop: start=0, step=1, limit=4
    $region2: #{_fused_encode.1} parent=1 // loop_pre_header
      _
    $region3: #{_fused_encode.1} parent=1 // loop_header
      %s11 = sphi 0, %s15
      %p12 = scmp.ge.s32.totalorder %s11, 4
      %s21 = sphi 0, %s23
      %s24 = sphi 0, %s21
      %s25 = sphi 0, %s24
      %s41 = sphi 0, %s25
      %s45 = sphi 0, %s45
      %s47 = sphi 0, %s45
      %s48 = sphi 0, %s47
      %s62 = sphi 0, %s48
      %s66 = sphi 0, %s66
      %s68 = sphi 0, %s66
      %s69 = sphi 0, %s68
      %s83 = sphi 0, %s69
      %s89 = sphi 0, %s91
      %s92 = sphi 0, %s89
      %s93 = sphi 0, %s92
      %s109 = sphi 0, %s93
    $region4: #{_fused_encode.1} parent=1 // loop_header_branch
      %14 = sbr.rel (%p12) target = $region8
    $region5: #{_fused_encode.1} parent=1 // loop_body
      %s16 = ssub.s32 %s11, 1
      %s17 = ssub.s32 %s11, 2
      %s18 = sadd.s32 %s11, 1
      %s19 = ssub.s32 %s11, %s18
      %p20 = scmp.eq.s32.totalorder %s19, 0
      %s22 = sadd.s32 %s21, 1
      %s23 = scalar_select %p20, %s21, %s22
      %p26 = pneg %p20
      %p27 = scmp.eq.s32.totalorder %s11, 1
      %p28 = por %p26, %p27
      %p29 = scmp.ne.s32.totalorder %s21, %s24
      %p30 = scmp.eq.s32.totalorder %s11, 0
      %p31 = por %p29, %p30
      %p32 = scmp.ne.s32.totalorder %s21, %s24
      %p33 = scmp.eq.s32.totalorder %s16, 1
      %p34 = por %p32, %p33
      %p35 = scmp.ne.s32.totalorder %s24, %s25
      %p36 = scmp.eq.s32.totalorder %s16, 0
      %p37 = por %p35, %p36
      %p38 = scmp.ne.s32.totalorder %s24, %s25
      %p39 = scmp.eq.s32.totalorder %s17, 1
      %p40 = por %p38, %p39
      %p42 = scmp.ne.s32.totalorder %s25, %s41
      %p43 = scmp.eq.s32.totalorder %s17, 0
      %p44 = por %p42, %p43
      %s46 = sadd.s32 %s45, 1
      %p49 = scmp.eq.s32.totalorder %s11, 1
      %p50 = scmp.ne.s32.totalorder %s45, %s47
      %p51 = scmp.eq.s32.totalorder %s11, 0
      %p52 = por %p50, %p51
      %p53 = scmp.ne.s32.totalorder %s45, %s47
      %p54 = scmp.eq.s32.totalorder %s16, 1
      %p55 = por %p53, %p54
      %p56 = scmp.ne.s32.totalorder %s47, %s48
      %p57 = scmp.eq.s32.totalorder %s16, 0
      %p58 = por %p56, %p57
      %p59 = scmp.ne.s32.totalorder %s47, %s48
      %p60 = scmp.eq.s32.totalorder %s17, 1
      %p61 = por %p59, %p60
      %p63 = scmp.ne.s32.totalorder %s48, %s62
      %p64 = scmp.eq.s32.totalorder %s17, 0
      %p65 = por %p63, %p64
      %s67 = sadd.s32 %s66, 1
      %p70 = scmp.eq.s32.totalorder %s11, 1
      %p71 = scmp.ne.s32.totalorder %s66, %s68
      %p72 = scmp.eq.s32.totalorder %s11, 0
      %p73 = por %p71, %p72
      %p74 = scmp.ne.s32.totalorder %s66, %s68
      %p75 = scmp.eq.s32.totalorder %s16, 1
      %p76 = por %p74, %p75
      %p77 = scmp.ne.s32.totalorder %s68, %s69
      %p78 = scmp.eq.s32.totalorder %s16, 0
      %p79 = por %p77, %p78
      %p80 = scmp.ne.s32.totalorder %s68, %s69
      %p81 = scmp.eq.s32.totalorder %s17, 1
      %p82 = por %p80, %p81
      %p84 = scmp.ne.s32.totalorder %s69, %s83
      %p85 = scmp.eq.s32.totalorder %s17, 0
      %p86 = por %p84, %p85
      %s87 = ssub.s32 %s11, %s18
      %p88 = scmp.eq.s32.totalorder %s87, 0
      %s90 = sadd.s32 %s89, 1
      %s91 = scalar_select %p88, %s89, %s90
      %p94 = pneg %p88
      %p95 = scmp.eq.s32.totalorder %s11, 1
      %p96 = por %p94, %p95
      %p97 = scmp.ne.s32.totalorder %s89, %s92
      %p98 = scmp.eq.s32.totalorder %s11, 0
      %p99 = por %p97, %p98
      %p100 = scmp.ne.s32.totalorder %s89, %s92
      %p101 = scmp.eq.s32.totalorder %s16, 1
      %p102 = por %p100, %p101
      %p103 = scmp.ne.s32.totalorder %s92, %s93
      %p104 = scmp.eq.s32.totalorder %s16, 0
      %p105 = por %p103, %p104
      %p106 = scmp.ne.s32.totalorder %s92, %s93
      %p107 = scmp.eq.s32.totalorder %s17, 1
      %p108 = por %p106, %p107
      %p110 = scmp.ne.s32.totalorder %s93, %s109
      %p111 = scmp.eq.s32.totalorder %s17, 0
      %p112 = por %p110, %p111
      %p113 = scmp.le.s32.totalorder 1, %s11
      %p114 = scmp.lt.s32.totalorder %s11, 3
      %p115 = pnand %p113, %p114
      %p116 = pneg %p115
      // Predicated region
      $region9: #{_fused_encode.1} parent=5 // pred_check
        _
      $region10: #{_fused_encode.1} parent=5 // pred_check_branch
        %118 = sbr.rel (%p115) target = $region12
      $region11: #{_fused_encode.1} parent=5 // pred_region
        %s119 = ssub.s32 %s11, 1
        // Predicated region
        $region13: #{_fused_encode.1} parent=11 // pred_check
          %p120 = pneg %p58
        $region14: #{_fused_encode.1} parent=11 // pred_check_branch
          %122 = sbr.rel (%p120) target = $region16
        $region15: #{_fused_encode.1} parent=11 // pred_region
          %s124 = ssub.s32 2048, 2048
          %125 = vsyncadd [#allocation3], %s124
          %s126 = sshll.u32 [#allocation2], 4
          %s127 = int_to_ptr.vmem [resolvable:$true] %s126
          %132 = dma.hbm_to_vmem [thread:$0]  %s1, 2048, %s127, [#allocation3], 64, 64, 4
        $region16: #{_fused_encode.1} parent=11 // pred_fallthru
          _
        // Predicated region
        $region17: #{_fused_encode.1} parent=11 // pred_check
          %p133 = pneg %p79
        $region18: #{_fused_encode.1} parent=11 // pred_check_branch
          %135 = sbr.rel (%p133) target = $region20
        $region19: #{_fused_encode.1} parent=11 // pred_region
          %s137 = ssub.s32 2048, 2048
          %138 = vsyncadd [#allocation5], %s137
          %s139 = sshll.u32 [#allocation4], 4
          %s140 = int_to_ptr.vmem [resolvable:$true] %s139
          %145 = dma.hbm_to_vmem [thread:$0]  %s2, 2048, %s140, [#allocation5], 64, 64, 4
        $region20: #{_fused_encode.1} parent=11 // pred_fallthru
          _
      $region12: #{_fused_encode.1} parent=5 // pred_fallthru
        _
      %p146 = scmp.lt.s32.totalorder %s11, 2
      // Predicated region
      $region21: #{_fused_encode.1} parent=5 // pred_check
        %p147 = pneg %p146
      $region22: #{_fused_encode.1} parent=5 // pred_check_branch
        %149 = sbr.rel (%p147) target = $region24
      $region23: #{_fused_encode.1} parent=5 // pred_region
        // Predicated region
        $region25: #{_fused_encode.1} parent=23 // pred_check
          %p150 = pneg %p31
        $region26: #{_fused_encode.1} parent=23 // pred_check_branch
          %152 = sbr.rel (%p150) target = $region28
        $region27: #{_fused_encode.1} parent=23 // pred_region
          %p153 = scmp.lt.s32.totalorder %s11, 1
          %s154 = scalar_select %p153, %s11, 1
          %s155 = smul.addr %s154, 8
          %s156 = scalar_lea.vmem %s0, %s155
        $region28: #{_fused_encode.1} parent=23 // pred_fallthru
          _
      $region24: #{_fused_encode.1} parent=5 // pred_fallthru
        _
      %p157 = scmp.le.s32.totalorder 1, %s11
      %p158 = scmp.lt.s32.totalorder %s11, 3
      %p159 = pnand %p157, %p158
      %p160 = pneg %p159
      // Predicated region
      $region29: #{_fused_encode.1} parent=5 // pred_check
        _
      $region30: #{_fused_encode.1} parent=5 // pred_check_branch
        %162 = sbr.rel (%p159) target = $region32
      $region31: #{_fused_encode.1} parent=5 // pred_region
        %s163 = ssub.s32 %s11, 1
        // Predicated region
        $region33: #{_fused_encode.1} parent=31 // pred_check
          %p164 = pneg %p58
        $region34: #{_fused_encode.1} parent=31 // pred_check_branch
          %166 = sbr.rel (%p164) target = $region36
        $region35: #{_fused_encode.1} parent=31 // pred_region
          %167 = dma.done [#allocation3], 2048
        $region36: #{_fused_encode.1} parent=31 // pred_fallthru
          _
        // Predicated region
        $region37: #{_fused_encode.1} parent=31 // pred_check
          %p168 = pneg %p79
        $region38: #{_fused_encode.1} parent=31 // pred_check_branch
          %170 = sbr.rel (%p168) target = $region40
        $region39: #{_fused_encode.1} parent=31 // pred_region
          %171 = dma.done [#allocation5], 2048
        $region40: #{_fused_encode.1} parent=31 // pred_fallthru
          _
        %p172 = scmp.lt.s32.totalorder %s16, 1
        %s173 = scalar_select %p172, %s16, 1
        %s174 = smul.addr %s173, 8
        %s175 = scalar_lea.vmem %s0, %s174
        %p176 = pneg %p37
        %p177 = pneg %p34
        %p178 = pneg %p58
        %p179 = pneg %p55
        %p180 = pneg %p79
        %p181 = pneg %p76
        %p182 = pneg %p105
        %p183 = pneg %p102
        %p184 = scmp.lt.s32.totalorder %s16, 1
        %s185 = scalar_select %p184, %s16, 1
        %s186 = smul.addr %s185, 8
        %s187 = scalar_lea.vmem %s3, %s186
        %p188 = scmp.lt.s32.totalorder %s16, 1
        %s189 = scalar_select %p188, %s16, 1
        %s190 = smul.addr %s189, 8
        %s191 = scalar_lea.vmem %s0, %s190
        %p192 = scmp.lt.s32.totalorder %s16, 1
        %s193 = scalar_select %p192, %s16, 1
        %s194 = smul.addr %s193, 8
        %s195 = scalar_lea.vmem %s3, %s194
        %v197 = vld [vmem:[%s191] sm:$0xff]
        %v198 = vld [vmem:[#allocation2] sm:$0xf]
        %v199 = vld [vmem:[#allocation2 + $0x4] sm:$0xf]
        %v200 = vld [vmem:[#allocation2 + $0x8] sm:$0xf]
        %v201 = vld [vmem:[#allocation2 + $0xc] sm:$0xf]
        %v202 = vld [vmem:[#allocation2 + $0x10] sm:$0xf]
        %v203 = vld [vmem:[#allocation2 + $0x14] sm:$0xf]
        %v204 = vld [vmem:[#allocation2 + $0x18] sm:$0xf]
        %v205 = vld [vmem:[#allocation2 + $0x1c] sm:$0xf]
        %v206 = vld [vmem:[#allocation2 + $0x20] sm:$0xf]
        %v207 = vld [vmem:[#allocation2 + $0x24] sm:$0xf]
        %v208 = vld [vmem:[#allocation2 + $0x28] sm:$0xf]
        %v209 = vld [vmem:[#allocation2 + $0x2c] sm:$0xf]
        %v210 = vld [vmem:[#allocation2 + $0x30] sm:$0xf]
        %v211 = vld [vmem:[#allocation2 + $0x34] sm:$0xf]
        %v212 = vld [vmem:[#allocation2 + $0x38] sm:$0xf]
        %v213 = vld [vmem:[#allocation2 + $0x3c] sm:$0xf]
        %v214 = vld [vmem:[#allocation2 + $0x40] sm:$0xf]
        %v215 = vld [vmem:[#allocation2 + $0x44] sm:$0xf]
        %v216 = vld [vmem:[#allocation2 + $0x48] sm:$0xf]
        %v217 = vld [vmem:[#allocation2 + $0x4c] sm:$0xf]
        %v218 = vld [vmem:[#allocation2 + $0x50] sm:$0xf]
        %v219 = vld [vmem:[#allocation2 + $0x54] sm:$0xf]
        %v220 = vld [vmem:[#allocation2 + $0x58] sm:$0xf]
        %v221 = vld [vmem:[#allocation2 + $0x5c] sm:$0xf]
        %v222 = vld [vmem:[#allocation2 + $0x60] sm:$0xf]
        %v223 = vld [vmem:[#allocation2 + $0x64] sm:$0xf]
        %v224 = vld [vmem:[#allocation2 + $0x68] sm:$0xf]
        %v225 = vld [vmem:[#allocation2 + $0x6c] sm:$0xf]
        %v226 = vld [vmem:[#allocation2 + $0x70] sm:$0xf]
        %v227 = vld [vmem:[#allocation2 + $0x74] sm:$0xf]
        %v228 = vld [vmem:[#allocation2 + $0x78] sm:$0xf]
        %v229 = vld [vmem:[#allocation2 + $0x7c] sm:$0xf]
        %v230 = vld [vmem:[#allocation4] sm:$0xf]
        %v231 = vld [vmem:[#allocation4 + $0x4] sm:$0xf]
        %v232 = vld [vmem:[#allocation4 + $0x8] sm:$0xf]
        %v233 = vld [vmem:[#allocation4 + $0xc] sm:$0xf]
        %v234 = vld [vmem:[#allocation4 + $0x10] sm:$0xf]
        %v235 = vld [vmem:[#allocation4 + $0x14] sm:$0xf]
        %v236 = vld [vmem:[#allocation4 + $0x18] sm:$0xf]
        %v237 = vld [vmem:[#allocation4 + $0x1c] sm:$0xf]
        %v238 = vld [vmem:[#allocation4 + $0x20] sm:$0xf]
        %v239 = vld [vmem:[#allocation4 + $0x24] sm:$0xf]
        %v240 = vld [vmem:[#allocation4 + $0x28] sm:$0xf]
        %v241 = vld [vmem:[#allocation4 + $0x2c] sm:$0xf]
        %v242 = vld [vmem:[#allocation4 + $0x30] sm:$0xf]
        %v243 = vld [vmem:[#allocation4 + $0x34] sm:$0xf]
        %v244 = vld [vmem:[#allocation4 + $0x38] sm:$0xf]
        %v245 = vld [vmem:[#allocation4 + $0x3c] sm:$0xf]
        %v246 = vld [vmem:[#allocation4 + $0x40] sm:$0xf]
        %v247 = vld [vmem:[#allocation4 + $0x44] sm:$0xf]
        %v248 = vld [vmem:[#allocation4 + $0x48] sm:$0xf]
        %v249 = vld [vmem:[#allocation4 + $0x4c] sm:$0xf]
        %v250 = vld [vmem:[#allocation4 + $0x50] sm:$0xf]
        %v251 = vld [vmem:[#allocation4 + $0x54] sm:$0xf]
        %v252 = vld [vmem:[#allocation4 + $0x58] sm:$0xf]
        %v253 = vld [vmem:[#allocation4 + $0x5c] sm:$0xf]
        %v254 = vld [vmem:[#allocation4 + $0x60] sm:$0xf]
        %v255 = vld [vmem:[#allocation4 + $0x64] sm:$0xf]
        %v256 = vld [vmem:[#allocation4 + $0x68] sm:$0xf]
        %v257 = vld [vmem:[#allocation4 + $0x6c] sm:$0xf]
        %v258 = vld [vmem:[#allocation4 + $0x70] sm:$0xf]
        %v259 = vld [vmem:[#allocation4 + $0x74] sm:$0xf]
        %v260 = vld [vmem:[#allocation4 + $0x78] sm:$0xf]
        %v261 = vld [vmem:[#allocation4 + $0x7c] sm:$0xf]
        %v262 = vlaneseq
        %v263 = vand.u32 %v262, 127
        %v264 = vadd.s32 %v263, 128
        %265 = vset.pattern.permute.xlu0 0
        %266 = vperm.xlu0 %265, %v197
        %v267 = vpop.permute.xlu0 %266
        %vm268 = vcmp.eq.s32.totalorder %v263, %v267
        %vm269 = vcmp.eq.s32.totalorder %v264, %v267
        %270 = vset.pattern.permute.xlu0 1
        %271 = vperm.xlu0 %270, %v197
        %v272 = vpop.permute.xlu0 %271
        %vm273 = vcmp.eq.s32.totalorder %v263, %v272
        %vm274 = vcmp.eq.s32.totalorder %v264, %v272
        %vm275 = vmor %vm268, %vm273
        %vm276 = vmor %vm269, %vm274
        %277 = vset.pattern.permute.xlu0 2
        %278 = vperm.xlu0 %277, %v197
        %v279 = vpop.permute.xlu0 %278
        %vm280 = vcmp.eq.s32.totalorder %v263, %v279
        %vm281 = vcmp.eq.s32.totalorder %v264, %v279
        %vm282 = vmor %vm275, %vm280
        %vm283 = vmor %vm276, %vm281
        %284 = vset.pattern.permute.xlu0 3
        %285 = vperm.xlu0 %284, %v197
        %v286 = vpop.permute.xlu0 %285
        %vm287 = vcmp.eq.s32.totalorder %v263, %v286
        %vm288 = vcmp.eq.s32.totalorder %v264, %v286
        %vm289 = vmor %vm282, %vm287
        %vm290 = vmor %vm283, %vm288
        %v291 = vsel %vm289, 1, 0
        %v292 = vsel %vm290, 1, 0
        %v293 = vcvt.s32.f32 %v291
        %v294 = vcvt.s32.f32 %v292
        %v295 = vpack.c.bf16 %v293, %v293
        %v296 = vpack.c.bf16 %v294, %v294
        %v329 = vunpack.c.l.b16 %v230
        %v330 = vunpack.c.l.b16 %v231
        %v331 = vunpack.c.l.b16 %v232
        %v332 = vunpack.c.l.b16 %v233
        %v333 = vunpack.c.l.b16 %v234
        %v334 = vunpack.c.l.b16 %v235
        %v335 = vunpack.c.l.b16 %v236
        %v336 = vunpack.c.l.b16 %v237
        %v337 = vunpack.c.l.b16 %v238
        %v338 = vunpack.c.l.b16 %v239
        %v339 = vunpack.c.l.b16 %v240
        %v340 = vunpack.c.l.b16 %v241
        %v341 = vunpack.c.l.b16 %v242
        %v342 = vunpack.c.l.b16 %v243
        %v343 = vunpack.c.l.b16 %v244
        %v344 = vunpack.c.l.b16 %v245
        %v345 = vunpack.c.l.b16 %v246
        %v346 = vunpack.c.l.b16 %v247
        %v347 = vunpack.c.l.b16 %v248
        %v348 = vunpack.c.l.b16 %v249
        %v349 = vunpack.c.l.b16 %v250
        %v350 = vunpack.c.l.b16 %v251
        %v351 = vunpack.c.l.b16 %v252
        %v352 = vunpack.c.l.b16 %v253
        %v353 = vunpack.c.l.b16 %v254
        %v354 = vunpack.c.l.b16 %v255
        %v355 = vunpack.c.l.b16 %v256
        %v356 = vunpack.c.l.b16 %v257
        %v357 = vunpack.c.l.b16 %v258
        %v358 = vunpack.c.l.b16 %v259
        %v359 = vunpack.c.l.b16 %v260
        %v360 = vunpack.c.l.b16 %v261
        %v361 = vpack.c.b16 %v330, %v329
        %v362 = vpack.c.b16 %v332, %v331
        %v363 = vpack.c.b16 %v334, %v333
        %v364 = vpack.c.b16 %v336, %v335
        %v365 = vpack.c.b16 %v338, %v337
        %v366 = vpack.c.b16 %v340, %v339
        %v367 = vpack.c.b16 %v342, %v341
        %v368 = vpack.c.b16 %v344, %v343
        %v369 = vpack.c.b16 %v346, %v345
        %v370 = vpack.c.b16 %v348, %v347
        %v371 = vpack.c.b16 %v350, %v349
        %v372 = vpack.c.b16 %v352, %v351
        %v373 = vpack.c.b16 %v354, %v353
        %v374 = vpack.c.b16 %v356, %v355
        %v375 = vpack.c.b16 %v358, %v357
        %v376 = vpack.c.b16 %v360, %v359
        %393 = vmatprep.subr.bf16.mxu0 0
        %394 = vmatpush1.bf16.msra.mxu0 %v361
        %395 = vmatprep.subr.bf16.mxu0 0
        %396 = vmatpush1.bf16.msra.mxu0 %v362
        %397 = vmatprep.subr.bf16.mxu0 0
        %398 = vmatpush1.bf16.msra.mxu0 %v363
        %399 = vmatprep.subr.bf16.mxu0 0
        %400 = vmatpush1.bf16.msra.mxu0 %v364
        %401 = vmatprep.subr.bf16.mxu0 0
        %402 = vmatpush1.bf16.msra.mxu0 %v365
        %403 = vmatprep.subr.bf16.mxu0 0
        %404 = vmatpush1.bf16.msra.mxu0 %v366
        %405 = vmatprep.subr.bf16.mxu0 0
        %406 = vmatpush1.bf16.msra.mxu0 %v367
        %407 = vmatprep.subr.bf16.mxu0 0
        %408 = vmatpush1.bf16.msra.mxu0 %v368
        %409 = vmatprep.subr.bf16.mxu0 0
        %410 = vmatpush1.bf16.msra.mxu0 %v369
        %411 = vmatprep.subr.bf16.mxu0 0
        %412 = vmatpush1.bf16.msra.mxu0 %v370
        %413 = vmatprep.subr.bf16.mxu0 0
        %414 = vmatpush1.bf16.msra.mxu0 %v371
        %415 = vmatprep.subr.bf16.mxu0 0
        %416 = vmatpush1.bf16.msra.mxu0 %v372
        %417 = vmatprep.subr.bf16.mxu0 0
        %418 = vmatpush1.bf16.msra.mxu0 %v373
        %419 = vmatprep.subr.bf16.mxu0 0
        %420 = vmatpush1.bf16.msra.mxu0 %v374
        %421 = vmatprep.subr.bf16.mxu0 0
        %422 = vmatpush1.bf16.msra.mxu0 %v375
        %423 = vmatprep.subr.bf16.mxu0 0
        %424 = vmatpush1.bf16.msra.mxu0 %v376
        %425 = vmatprep.mubr.bf16.mxu0 %v296
        %426 = vmatmul.mubr.bf16.gmra.mrb[0].mxu0 %v295
        %v427 = vpop.f32.mrb[0].mxu0
        %v428 = vadd.f32 0.0, %v427
        %v429 = vpop.f32.mrb[0].mxu0
        %v430 = vpop.f32.mrb[0].mxu0
        %v431 = vpop.f32.mrb[0].mxu0
        %432 = vdwg.mxu0
        %v465 = vunpack.c.l.b16 %v198
        %v466 = vunpack.c.l.b16 %v199
        %v467 = vunpack.c.l.b16 %v200
        %v468 = vunpack.c.l.b16 %v201
        %v469 = vunpack.c.l.b16 %v202
        %v470 = vunpack.c.l.b16 %v203
        %v471 = vunpack.c.l.b16 %v204
        %v472 = vunpack.c.l.b16 %v205
        %v473 = vunpack.c.l.b16 %v206
        %v474 = vunpack.c.l.b16 %v207
        %v475 = vunpack.c.l.b16 %v208
        %v476 = vunpack.c.l.b16 %v209
        %v477 = vunpack.c.l.b16 %v210
        %v478 = vunpack.c.l.b16 %v211
        %v479 = vunpack.c.l.b16 %v212
        %v480 = vunpack.c.l.b16 %v213
        %v481 = vunpack.c.l.b16 %v214
        %v482 = vunpack.c.l.b16 %v215
        %v483 = vunpack.c.l.b16 %v216
        %v484 = vunpack.c.l.b16 %v217
        %v485 = vunpack.c.l.b16 %v218
        %v486 = vunpack.c.l.b16 %v219
        %v487 = vunpack.c.l.b16 %v220
        %v488 = vunpack.c.l.b16 %v221
        %v489 = vunpack.c.l.b16 %v222
        %v490 = vunpack.c.l.b16 %v223
        %v491 = vunpack.c.l.b16 %v224
        %v492 = vunpack.c.l.b16 %v225
        %v493 = vunpack.c.l.b16 %v226
        %v494 = vunpack.c.l.b16 %v227
        %v495 = vunpack.c.l.b16 %v228
        %v496 = vunpack.c.l.b16 %v229
        %v497 = vpack.c.b16 %v466, %v465
        %v498 = vpack.c.b16 %v468, %v467
        %v499 = vpack.c.b16 %v470, %v469
        %v500 = vpack.c.b16 %v472, %v471
        %v501 = vpack.c.b16 %v474, %v473
        %v502 = vpack.c.b16 %v476, %v475
        %v503 = vpack.c.b16 %v478, %v477
        %v504 = vpack.c.b16 %v480, %v479
        %v505 = vpack.c.b16 %v482, %v481
        %v506 = vpack.c.b16 %v484, %v483
        %v507 = vpack.c.b16 %v486, %v485
        %v508 = vpack.c.b16 %v488, %v487
        %v509 = vpack.c.b16 %v490, %v489
        %v510 = vpack.c.b16 %v492, %v491
        %v511 = vpack.c.b16 %v494, %v493
        %v512 = vpack.c.b16 %v496, %v495
        %529 = vmatprep.subr.bf16.mxu0 0
        %530 = vmatpush1.bf16.msra.mxu0 %v497
        %531 = vmatprep.subr.bf16.mxu0 0
        %532 = vmatpush1.bf16.msra.mxu0 %v498
        %533 = vmatprep.subr.bf16.mxu0 0
        %534 = vmatpush1.bf16.msra.mxu0 %v499
        %535 = vmatprep.subr.bf16.mxu0 0
        %536 = vmatpush1.bf16.msra.mxu0 %v500
        %537 = vmatprep.subr.bf16.mxu0 0
        %538 = vmatpush1.bf16.msra.mxu0 %v501
        %539 = vmatprep.subr.bf16.mxu0 0
        %540 = vmatpush1.bf16.msra.mxu0 %v502
        %541 = vmatprep.subr.bf16.mxu0 0
        %542 = vmatpush1.bf16.msra.mxu0 %v503
        %543 = vmatprep.subr.bf16.mxu0 0
        %544 = vmatpush1.bf16.msra.mxu0 %v504
        %545 = vmatprep.subr.bf16.mxu0 0
        %546 = vmatpush1.bf16.msra.mxu0 %v505
        %547 = vmatprep.subr.bf16.mxu0 0
        %548 = vmatpush1.bf16.msra.mxu0 %v506
        %549 = vmatprep.subr.bf16.mxu0 0
        %550 = vmatpush1.bf16.msra.mxu0 %v507
        %551 = vmatprep.subr.bf16.mxu0 0
        %552 = vmatpush1.bf16.msra.mxu0 %v508
        %553 = vmatprep.subr.bf16.mxu0 0
        %554 = vmatpush1.bf16.msra.mxu0 %v509
        %555 = vmatprep.subr.bf16.mxu0 0
        %556 = vmatpush1.bf16.msra.mxu0 %v510
        %557 = vmatprep.subr.bf16.mxu0 0
        %558 = vmatpush1.bf16.msra.mxu0 %v511
        %559 = vmatprep.subr.bf16.mxu0 0
        %560 = vmatpush1.bf16.msra.mxu0 %v512
        %561 = vmatprep.mubr.bf16.mxu0 %v296
        %562 = vmatmul.mubr.bf16.gmra.mrb[0].mxu0 %v295
        %v563 = vpop.f32.mrb[0].mxu0
        %v564 = vadd.f32 %v428, %v563
        %v565 = vpop.f32.mrb[0].mxu0
        %v566 = vpop.f32.mrb[0].mxu0
        %v567 = vpop.f32.mrb[0].mxu0
        %568 = vdwg.mxu0
        %569 = vst [vmem:[%s195] sm:$0xff] %v564
        %p570 = scmp.lt.s32.totalorder %s16, 1
        %s571 = scalar_select %p570, %s16, 1
        %s572 = smul.addr %s571, 8
        %s573 = scalar_lea.vmem %s3, %s572
        // Predicated region
        $region41: #{_fused_encode.1} parent=31 // pred_check
          %p574 = pneg %p102
        $region42: #{_fused_encode.1} parent=31 // pred_check_branch
          %576 = sbr.rel (%p574) target = $region44
        $region43: #{_fused_encode.1} parent=31 // pred_region
          _
        $region44: #{_fused_encode.1} parent=31 // pred_fallthru
          _
      $region32: #{_fused_encode.1} parent=5 // pred_fallthru
        _
      %p577 = scmp.le.s32.totalorder 2, %s11
      // Predicated region
      $region45: #{_fused_encode.1} parent=5 // pred_check
        %p578 = pneg %p577
      $region46: #{_fused_encode.1} parent=5 // pred_check_branch
        %580 = sbr.rel (%p578) target = $region48
      $region47: #{_fused_encode.1} parent=5 // pred_region
        %s581 = ssub.s32 %s11, 2
        // Predicated region
        $region49: #{_fused_encode.1} parent=47 // pred_check
          %p582 = pneg %p108
        $region50: #{_fused_encode.1} parent=47 // pred_check_branch
          %584 = sbr.rel (%p582) target = $region52
        $region51: #{_fused_encode.1} parent=47 // pred_region
          %p585 = scmp.lt.s32.totalorder %s17, 1
          %s586 = scalar_select %p585, %s17, 1
          %s587 = smul.addr %s586, 8
          %s588 = scalar_lea.vmem %s3, %s587
        $region52: #{_fused_encode.1} parent=47 // pred_fallthru
          _
      $region48: #{_fused_encode.1} parent=5 // pred_fallthru
        _
    $region6: #{_fused_encode.1} parent=1 // loop_footer
      %s15 = sadd.s32 1, %s11
    $region7: #{_fused_encode.1} parent=1 // loop_footer_branch
      %10 = sbr.rel target = $region3
    $region8: #{_fused_encode.1} parent=1 // loop_exit
      _
    %589 = vsyncpa [#allocation3], 1
    %s590 = scalar_lea.sflag [#allocation3], 1
    %591 = vsyncpa %s590, 1
    %592 = vsyncpa [#allocation5], 1

</llo_original>
